<compile_context>
chip_gen: v6e
topology: v6e:2x2x1
jax: 0.10.0
libtpu: 0.0.40
codegen_flags: <defaults>
</compile_context>

<pallas_src>
import functools

import jax
import jax.numpy as jnp
from jax.experimental import pallas as pl
from jax.experimental.pallas import tpu as pltpu


LANE = 128   # TPU vreg lane width


def _round_up(n, m):
    return (n + m - 1) // m * m


def comatch_kernel(x_ref, wf_ref, bf_ref, wcat_ref, bcat_ref, w2_ref, b2_ref,
                   logits_ref, featproj_ref, *, c_pad):
    # Synthetic backbone feature extractor: Linear + ReLU (bf16 MXU, f32 acc).
    # x arrives f32 and is cast here (no wrapper-side cast copy).
    x = x_ref[...].astype(jnp.bfloat16)                                # [TM, D_in]
    feat = jnp.dot(x, wf_ref[...],
                   preferred_element_type=jnp.float32) + bf_ref[...]
    feat = jnp.maximum(feat, 0.0)                                      # [TM, F_pad] f32
    feat_bf = feat.astype(jnp.bfloat16)

    # Fused classifier head (only_fc) + mlp_proj[0]: single N = C_pad + F_pad
    # GEMM (>=256 wide) instead of two N=128 GEMMs.
    fused = jnp.dot(feat_bf, wcat_ref[...],
                    preferred_element_type=jnp.float32) + bcat_ref[...]
    logits_ref[...] = fused[:, :c_pad]                                 # [TM, C_pad]

    # mlp_proj: ReLU -> Linear
    h = jnp.maximum(fused[:, c_pad:], 0.0).astype(jnp.bfloat16)        # [TM, F_pad]
    p = jnp.dot(h, w2_ref[...],
                preferred_element_type=jnp.float32) + b2_ref[...]      # [TM, P_pad]

    # l2norm: multiply by rsqrt (EUP slot) instead of divide; eps guards zero
    # rows.  Padded lanes of p are exactly zero, so the norm is unaffected.
    inv = jax.lax.rsqrt(jnp.sum(p * p, axis=1, keepdims=True) + 1e-12)
    featproj_ref[...] = p * inv


@jax.jit
def comatch_forward(x_nchw, params):
    wf, bf, wfc, bfc, w1, b1, w2, b2 = params
    B = x_nchw.shape[0]
    d_in = wf.shape[0]
    F = wf.shape[1]
    C = wfc.shape[1]
    P = w2.shape[1]

    F_pad = _round_up(F, LANE)
    C_pad = _round_up(C, LANE)
    P_pad = _round_up(P, LANE)
    N_cat = C_pad + F_pad

    # Right-size the batch tile to the real batch (16 = bf16 sublane pack);
    # for large batches on v6e/v7x, 256 is worth sweeping.
    TM = min(128, _round_up(B, 16))
    B_pad = _round_up(B, TM)

    # ---- wrapper-side layout plumbing: flatten + zero-pad ------------------
    # (x stays f32 in HBM; the bf16 cast happens inside the kernel.)
    x_flat = x_nchw.reshape(B, -1)
    x_p = jnp.pad(x_flat, ((0, B_pad - B), (0, 0))).astype(jnp.float32)

    def pad2(a, rows, cols):
        return jnp.pad(a, ((0, rows - a.shape[0]), (0, cols - a.shape[1])))

    wf_p = pad2(wf, d_in, F_pad).astype(jnp.bfloat16)
    bf_p = pad2(bf, 1, F_pad).astype(jnp.float32)
    # Fuse the two GEMMs that consume feat: [wfc | w1] along the output dim.
    wcat_p = jnp.concatenate(
        [pad2(wfc, F_pad, C_pad), pad2(w1, F_pad, F_pad)],
        axis=1).astype(jnp.bfloat16)                                   # [F_pad, N_cat]
    bcat_p = jnp.concatenate(
        [pad2(bfc, 1, C_pad), pad2(b1, 1, F_pad)],
        axis=1).astype(jnp.float32)                                    # [1, N_cat]
    w2_p = pad2(w2, F_pad, P_pad).astype(jnp.bfloat16)
    b2_p = pad2(b2, 1, P_pad).astype(jnp.float32)

    grid = (B_pad // TM,)

    # Batch-tiled inputs/outputs move per grid step; weights/biases use a
    # constant index_map so they are fetched once and stay VMEM-resident.
    x_spec = pl.BlockSpec((TM, d_in), lambda i: (i, 0))
    wf_spec = pl.BlockSpec((d_in, F_pad), lambda i: (0, 0))
    bf_spec = pl.BlockSpec((1, F_pad), lambda i: (0, 0))
    wcat_spec = pl.BlockSpec((F_pad, N_cat), lambda i: (0, 0))
    bcat_spec = pl.BlockSpec((1, N_cat), lambda i: (0, 0))
    w2_spec = pl.BlockSpec((F_pad, P_pad), lambda i: (0, 0))
    b2_spec = pl.BlockSpec((1, P_pad), lambda i: (0, 0))

    out_specs = (pl.BlockSpec((TM, C_pad), lambda i: (i, 0)),
                 pl.BlockSpec((TM, P_pad), lambda i: (i, 0)))
    out_shape = (jax.ShapeDtypeStruct((B_pad, C_pad), jnp.float32),
                 jax.ShapeDtypeStruct((B_pad, P_pad), jnp.float32))

    flops = 2 * B_pad * (d_in * F_pad + F_pad * N_cat + F_pad * P_pad)
    bytes_accessed = (
        x_p.size * 4
        + (wf_p.size + wcat_p.size + w2_p.size) * 2
        + (bf_p.size + bcat_p.size + b2_p.size) * 4
        + B_pad * (C_pad + P_pad) * 4)
    cost = pl.CostEstimate(flops=flops, transcendentals=B_pad,
                           bytes_accessed=bytes_accessed)

    # Scoped-VMEM budget: resident weights (2-buffered by the pipeliner),
    # double-buffered batch / output tiles, live intermediates, plus headroom.
    # Defaults (16/32 MiB) would choke at real backbone sizes; stay under
    # v7x's 64 MiB physical budget.
    resident = ((wf_p.size + wcat_p.size + w2_p.size) * 2 * 2
                + (bf_p.size + bcat_p.size + b2_p.size) * 4 * 2
                + 2 * TM * d_in * 4
                + 2 * TM * (C_pad + P_pad) * 4
                + TM * (2 * F_pad + N_cat + P_pad) * 4)
    vmem_limit = max(16 << 20, min(60 << 20, int(1.5 * resident) + (2 << 20)))

    logits_p, featproj_p = pl.pallas_call(
        functools.partial(comatch_kernel, c_pad=C_pad),
        out_shape=out_shape,
        grid=grid,
        in_specs=[x_spec, wf_spec, bf_spec, wcat_spec, bcat_spec,
                  w2_spec, b2_spec],
        out_specs=out_specs,
        compiler_params=pltpu.CompilerParams(
            dimension_semantics=("parallel",),
            vmem_limit_bytes=vmem_limit),
        cost_estimate=cost,
    )(x_p, wf_p, bf_p, wcat_p, bcat_p, w2_p, b2_p)

    # Slice off the lane/batch padding (padded rows carry bias+ReLU garbage;
    # padded logits columns are exactly 0.0 — keep this slice in place).
    return {'logits': logits_p[:B, :C], 'feat': featproj_p[:B, :P]}


def comatch_reference(x_nchw, params):
    """Pure-JAX reference with the same bf16-weight / f32-accum numerics."""
    wf, bf, wfc, bfc, w1, b1, w2, b2 = params
    B = x_nchw.shape[0]
    x = x_nchw.reshape(B, -1)

    def mm(a, w):
        return jnp.dot(a.astype(jnp.bfloat16), w.astype(jnp.bfloat16),
                       preferred_element_type=jnp.float32)

    feat = jnp.maximum(mm(x, wf) + bf, 0.0)
    logits = mm(feat, wfc) + bfc
    h = jnp.maximum(mm(feat, w1) + b1, 0.0)
    p = mm(h, w2) + b2
    inv = jax.lax.rsqrt(jnp.sum(p * p, axis=1, keepdims=True) + 1e-12)
    return {'logits': logits, 'feat': p * inv}


def init_params(key, d_in, num_features, num_classes, proj_size):
    ks = jax.random.split(key, 8)
    scale = 0.02

    def lin(kw, fan_in, fan_out):
        return (scale * jax.random.normal(kw, (fan_in, fan_out))).astype(jnp.float32)

    wf = lin(ks[0], d_in, num_features)
    bf = (scale * jax.random.normal(ks[1], (1, num_features))).astype(jnp.float32)
    wfc = lin(ks[2], num_features, num_classes)
    bfc = (scale * jax.random.normal(ks[3], (1, num_classes))).astype(jnp.float32)
    w1 = lin(ks[4], num_features, num_features)
    b1 = (scale * jax.random.normal(ks[5], (1, num_features))).astype(jnp.float32)
    w2 = lin(ks[6], num_features, proj_size)
    b2 = (scale * jax.random.normal(ks[7], (1, proj_size))).astype(jnp.float32)
    return (wf, bf, wfc, bfc, w1, b1, w2, b2)


if __name__ == "__main__":
    key = jax.random.PRNGKey(0)
    k_x, k_p = jax.random.split(key)

    # Small, module-consistent shapes.
    B, C, H, W = 4, 4, 16, 16          # NCHW input
    num_features = 64                  # backbone.num_features
    num_classes = 10
    proj_size = 128                    # CoMatch_Net default proj_size

    x = jax.random.normal(k_x, (B, C, H, W), dtype=jnp.float32)
    params = init_params(k_p, C * H * W, num_features, num_classes, proj_size)

    out = comatch_forward(x, params)
    jax.block_until_ready(out)

    assert out['logits'].shape == (B, num_classes)
    assert out['feat'].shape == (B, proj_size)

    # l2norm check: rows of feat should have unit L2 norm.
    norms = jnp.sqrt(jnp.sum(out['feat'] ** 2, axis=1))
    assert bool(jnp.all(jnp.abs(norms - 1.0) < 1e-3)), norms

    # Numerical check against a pure-JAX reference with matching numerics.
    ref = comatch_reference(x, params)
    assert bool(jnp.allclose(out['logits'], ref['logits'], rtol=2e-2, atol=1e-3))
    assert bool(jnp.allclose(out['feat'], ref['feat'], rtol=2e-2, atol=1e-3))

    print("KERNEL_OK")
</pallas_src>

<mosaic_0001>
module attributes {stable_mosaic.version = 11 : i64} {
  func.func @comatch_kernel(%arg0: i32, %arg1: memref<16x1024xf32, #tpu.memory_space<vmem>>, %arg2: memref<1024x128xbf16, #tpu.memory_space<vmem>>, %arg3: memref<1x128xf32, #tpu.memory_space<vmem>>, %arg4: memref<128x256xbf16, #tpu.memory_space<vmem>>, %arg5: memref<1x256xf32, #tpu.memory_space<vmem>>, %arg6: memref<128x128xbf16, #tpu.memory_space<vmem>>, %arg7: memref<1x128xf32, #tpu.memory_space<vmem>>, %arg8: memref<16x128xf32, #tpu.memory_space<vmem>>, %arg9: memref<16x128xf32, #tpu.memory_space<vmem>>) attributes {dimension_semantics = [#tpu.dimension_semantics<parallel>], iteration_bounds = array<i64: 1>, scalar_prefetch = 0 : i64, scratch_operands = 0 : i64, tpu.core_type = #tpu.core_type<tc>, window_params = [{transform_indices = @transform_0, window_bounds = array<i64: 16, 1024>}, {pipeline_mode = #tpu.pipeline_mode<synchronous>, transform_indices = @transform_1, window_bounds = array<i64: 1024, 128>}, {pipeline_mode = #tpu.pipeline_mode<synchronous>, transform_indices = @transform_2, window_bounds = array<i64: 1, 128>}, {pipeline_mode = #tpu.pipeline_mode<synchronous>, transform_indices = @transform_3, window_bounds = array<i64: 128, 256>}, {pipeline_mode = #tpu.pipeline_mode<synchronous>, transform_indices = @transform_4, window_bounds = array<i64: 1, 256>}, {pipeline_mode = #tpu.pipeline_mode<synchronous>, transform_indices = @transform_5, window_bounds = array<i64: 128, 128>}, {pipeline_mode = #tpu.pipeline_mode<synchronous>, transform_indices = @transform_6, window_bounds = array<i64: 1, 128>}, {transform_indices = @transform_7, window_bounds = array<i64: 16, 128>}, {transform_indices = @transform_8, window_bounds = array<i64: 16, 128>}]} {
    %c0 = arith.constant 0 : index
    %c0_0 = arith.constant 0 : index
    %0 = vector.load %arg1[%c0, %c0_0] : memref<16x1024xf32, #tpu.memory_space<vmem>>, vector<16x1024xf32>
    %1 = arith.truncf %0 : vector<16x1024xf32> to vector<16x1024xbf16>
    %c0_1 = arith.constant 0 : index
    %c0_2 = arith.constant 0 : index
    %2 = vector.load %arg2[%c0_1, %c0_2] : memref<1024x128xbf16, #tpu.memory_space<vmem>>, vector<1024x128xbf16>
    %cst = arith.constant dense<0.000000e+00> : vector<16x128xf32>
    %3 = tpu.matmul %1, %2, %cst {dimension_numbers = #tpu.dot_dimension_numbers<[1], [0], [0], [1], [0, 0, 1, 1], [], []>} : vector<16x1024xbf16>, vector<1024x128xbf16>, vector<16x128xf32> -> vector<16x128xf32>
    %c0_3 = arith.constant 0 : index
    %c0_4 = arith.constant 0 : index
    %4 = vector.load %arg3[%c0_3, %c0_4] : memref<1x128xf32, #tpu.memory_space<vmem>>, vector<1x128xf32>
    %5 = vector.broadcast %4 : vector<1x128xf32> to vector<16x128xf32>
    %6 = arith.addf %3, %5 : vector<16x128xf32>
    %cst_5 = arith.constant 0.000000e+00 : f32
    %7 = vector.broadcast %cst_5 : f32 to vector<16x128xf32>
    %8 = arith.maximumf %6, %7 : vector<16x128xf32>
    %9 = arith.truncf %8 : vector<16x128xf32> to vector<16x128xbf16>
    %c0_6 = arith.constant 0 : index
    %c0_7 = arith.constant 0 : index
    %10 = vector.load %arg4[%c0_6, %c0_7] : memref<128x256xbf16, #tpu.memory_space<vmem>>, vector<128x256xbf16>
    %cst_8 = arith.constant dense<0.000000e+00> : vector<16x256xf32>
    %11 = tpu.matmul %9, %10, %cst_8 {dimension_numbers = #tpu.dot_dimension_numbers<[1], [0], [0], [1], [0, 0, 1, 1], [], []>} : vector<16x128xbf16>, vector<128x256xbf16>, vector<16x256xf32> -> vector<16x256xf32>
    %c0_9 = arith.constant 0 : index
    %c0_10 = arith.constant 0 : index
    %12 = vector.load %arg5[%c0_9, %c0_10] : memref<1x256xf32, #tpu.memory_space<vmem>>, vector<1x256xf32>
    %13 = vector.broadcast %12 : vector<1x256xf32> to vector<16x256xf32>
    %14 = arith.addf %11, %13 : vector<16x256xf32>
    %15 = vector.extract_strided_slice %14 {offsets = [0, 0], sizes = [16, 128], strides = [1, 1]} : vector<16x256xf32> to vector<16x128xf32>
    %c0_11 = arith.constant 0 : index
    %c0_12 = arith.constant 0 : index
    %16 = vector.load %arg8[%c0_11, %c0_12] : memref<16x128xf32, #tpu.memory_space<vmem>>, vector<16x128xf32>
    tpu.vector_store %arg8[%c0_11, %c0_12], %15 {strides = array<i32>} : memref<16x128xf32, #tpu.memory_space<vmem>>, vector<16x128xf32>,
    %17 = vector.extract_strided_slice %14 {offsets = [0, 128], sizes = [16, 128], strides = [1, 1]} : vector<16x256xf32> to vector<16x128xf32>
    %cst_13 = arith.constant 0.000000e+00 : f32
    %18 = vector.broadcast %cst_13 : f32 to vector<16x128xf32>
    %19 = arith.maximumf %17, %18 : vector<16x128xf32>
    %20 = arith.truncf %19 : vector<16x128xf32> to vector<16x128xbf16>
    %c0_14 = arith.constant 0 : index
    %c0_15 = arith.constant 0 : index
    %21 = vector.load %arg6[%c0_14, %c0_15] : memref<128x128xbf16, #tpu.memory_space<vmem>>, vector<128x128xbf16>
    %cst_16 = arith.constant dense<0.000000e+00> : vector<16x128xf32>
    %22 = tpu.matmul %20, %21, %cst_16 {dimension_numbers = #tpu.dot_dimension_numbers<[1], [0], [0], [1], [0, 0, 1, 1], [], []>} : vector<16x128xbf16>, vector<128x128xbf16>, vector<16x128xf32> -> vector<16x128xf32>
    %c0_17 = arith.constant 0 : index
    %c0_18 = arith.constant 0 : index
    %23 = vector.load %arg7[%c0_17, %c0_18] : memref<1x128xf32, #tpu.memory_space<vmem>>, vector<1x128xf32>
    %24 = vector.broadcast %23 : vector<1x128xf32> to vector<16x128xf32>
    %25 = arith.addf %22, %24 : vector<16x128xf32>
    %26 = arith.mulf %25, %25 : vector<16x128xf32>
    %cst_19 = arith.constant dense<0.000000e+00> : vector<16xf32>
    %27 = vector.multi_reduction <add>, %26, %cst_19 [1] : vector<16x128xf32> to vector<16xf32>
    %28 = vector.shape_cast %27 : vector<16xf32> to vector<16x1xf32>
    %cst_20 = arith.constant 9.99999996E-13 : f32
    %29 = vector.broadcast %cst_20 : f32 to vector<16x1xf32>
    %30 = arith.addf %28, %29 : vector<16x1xf32>
    %31 = math.rsqrt %30 : vector<16x1xf32>
    %32 = vector.broadcast %31 : vector<16x1xf32> to vector<16x128xf32>
    %33 = arith.mulf %25, %32 : vector<16x128xf32>
    %c0_21 = arith.constant 0 : index
    %c0_22 = arith.constant 0 : index
    %34 = vector.load %arg9[%c0_21, %c0_22] : memref<16x128xf32, #tpu.memory_space<vmem>>, vector<16x128xf32>
    tpu.vector_store %arg9[%c0_21, %c0_22], %33 {strides = array<i32>} : memref<16x128xf32, #tpu.memory_space<vmem>>, vector<16x128xf32>,
    return
  }
  func.func @transform_0(%arg0: i32) -> (i32, i32) {
    %c0_i32 = arith.constant 0 : i32
    %c0_i32_0 = arith.constant 0 : i32
    return %arg0, %c0_i32 : i32, i32
  }
  func.func @transform_1(%arg0: i32) -> (i32, i32) {
    %c0_i32 = arith.constant 0 : i32
    %c0_i32_0 = arith.constant 0 : i32
    %c0_i32_1 = arith.constant 0 : i32
    return %c0_i32, %c0_i32_0 : i32, i32
  }
  func.func @transform_2(%arg0: i32) -> (i32, i32) {
    %c0_i32 = arith.constant 0 : i32
    %c0_i32_0 = arith.constant 0 : i32
    %c0_i32_1 = arith.constant 0 : i32
    return %c0_i32, %c0_i32_0 : i32, i32
  }
  func.func @transform_3(%arg0: i32) -> (i32, i32) {
    %c0_i32 = arith.constant 0 : i32
    %c0_i32_0 = arith.constant 0 : i32
    %c0_i32_1 = arith.constant 0 : i32
    return %c0_i32, %c0_i32_0 : i32, i32
  }
  func.func @transform_4(%arg0: i32) -> (i32, i32) {
    %c0_i32 = arith.constant 0 : i32
    %c0_i32_0 = arith.constant 0 : i32
    %c0_i32_1 = arith.constant 0 : i32
    return %c0_i32, %c0_i32_0 : i32, i32
  }
  func.func @transform_5(%arg0: i32) -> (i32, i32) {
    %c0_i32 = arith.constant 0 : i32
    %c0_i32_0 = arith.constant 0 : i32
    %c0_i32_1 = arith.constant 0 : i32
    return %c0_i32, %c0_i32_0 : i32, i32
  }
  func.func @transform_6(%arg0: i32) -> (i32, i32) {
    %c0_i32 = arith.constant 0 : i32
    %c0_i32_0 = arith.constant 0 : i32
    %c0_i32_1 = arith.constant 0 : i32
    return %c0_i32, %c0_i32_0 : i32, i32
  }
  func.func @transform_7(%arg0: i32) -> (i32, i32) {
    %c0_i32 = arith.constant 0 : i32
    %c0_i32_0 = arith.constant 0 : i32
    return %arg0, %c0_i32 : i32, i32
  }
  func.func @transform_8(%arg0: i32) -> (i32, i32) {
    %c0_i32 = arith.constant 0 : i32
    %c0_i32_0 = arith.constant 0 : i32
    return %arg0, %c0_i32 : i32, i32
  }
}

</mosaic_0001>

<llo_original>
// kernel: comatch_forward.1
$region0: #{comatch_forward.1}
  #allocation0 [shape = 'u32[]', space=smem, size = 0x4, offset = 0x4, fixed_abs, tag = 'smem constant byte address 0x4 - core index']
  #allocation1 [shape = 'u32[144,128]{1,0:T(1,128)}', space=vmem, size = 0x12000, scoped, tag = 'internal scratch']
  %s0 = inlined_call_operand.vmem [shape: f32[16,1024], index: 0, kind: input, shape index: {}]
  %s1 = inlined_call_operand.vmem [shape: bf16[1024,128], index: 1, kind: input, shape index: {}]
  %s2 = inlined_call_operand.vmem [shape: f32[1,128], index: 2, kind: input, shape index: {}]
  %s3 = inlined_call_operand.vmem [shape: bf16[128,256], index: 3, kind: input, shape index: {}]
  %s4 = inlined_call_operand.vmem [shape: f32[1,256], index: 4, kind: input, shape index: {}]
  %s5 = inlined_call_operand.vmem [shape: bf16[128,128], index: 5, kind: input, shape index: {}]
  %s6 = inlined_call_operand.vmem [shape: f32[1,128], index: 6, kind: input, shape index: {}]
  %s7 = inlined_call_operand.vmem [shape: f32[16,128], index: 7, kind: output, shape index: {0}]
  %s8 = inlined_call_operand.vmem [shape: f32[16,128], index: 8, kind: output, shape index: {1}]
  %9 = xla_tuple %s7, %s8
  %s10 = sld [smem:[#allocation0]]
  $region46: #{comatch_forward.1} parent=0
    _
  %s12 = ssub.s32 1, %s10
  %s13 = scalar_select 0, %s12, %s10
  // Predicated region
  $region2: #{comatch_forward.1} parent=0 // pred_check
    _
  $region3: #{comatch_forward.1} parent=0 // pred_check_branch
    %15 = sbr.rel (0) target = $region5
  $region4: #{comatch_forward.1} parent=0 // pred_region
    _
  $region5: #{comatch_forward.1} parent=0 // pred_fallthru
    _
  // Predicated region
  $region6: #{comatch_forward.1} parent=0 // pred_check
    _
  $region7: #{comatch_forward.1} parent=0 // pred_check_branch
    %17 = sbr.rel (0) target = $region9
  $region8: #{comatch_forward.1} parent=0 // pred_region
    _
  $region9: #{comatch_forward.1} parent=0 // pred_fallthru
    _
  // Predicated region
  $region10: #{comatch_forward.1} parent=0 // pred_check
    _
  $region11: #{comatch_forward.1} parent=0 // pred_check_branch
    %19 = sbr.rel (0) target = $region13
  $region12: #{comatch_forward.1} parent=0 // pred_region
    _
  $region13: #{comatch_forward.1} parent=0 // pred_fallthru
    _
  // Predicated region
  $region14: #{comatch_forward.1} parent=0 // pred_check
    _
  $region15: #{comatch_forward.1} parent=0 // pred_check_branch
    %21 = sbr.rel (0) target = $region17
  $region16: #{comatch_forward.1} parent=0 // pred_region
    _
  $region17: #{comatch_forward.1} parent=0 // pred_fallthru
    _
  // Predicated region
  $region18: #{comatch_forward.1} parent=0 // pred_check
    _
  $region19: #{comatch_forward.1} parent=0 // pred_check_branch
    %23 = sbr.rel (0) target = $region21
  $region20: #{comatch_forward.1} parent=0 // pred_region
    _
  $region21: #{comatch_forward.1} parent=0 // pred_fallthru
    _
  // Predicated region
  $region22: #{comatch_forward.1} parent=0 // pred_check
    _
  $region23: #{comatch_forward.1} parent=0 // pred_check_branch
    %25 = sbr.rel (0) target = $region25
  $region24: #{comatch_forward.1} parent=0 // pred_region
    _
  $region25: #{comatch_forward.1} parent=0 // pred_fallthru
    _
  // Predicated region
  $region26: #{comatch_forward.1} parent=0 // pred_check
    _
  $region27: #{comatch_forward.1} parent=0 // pred_check_branch
    %27 = sbr.rel (0) target = $region29
  $region28: #{comatch_forward.1} parent=0 // pred_region
    _
  $region29: #{comatch_forward.1} parent=0 // pred_fallthru
    _
  %v29 = vld [vmem:[%s0] sm:$0xff]
  %v30 = vld [vmem:[%s0 + $0x8] sm:$0xff]
  %v31 = vld [vmem:[%s0 + $0x10] sm:$0xff]
  %v32 = vld [vmem:[%s0 + $0x18] sm:$0xff]
  %v33 = vld [vmem:[%s0 + $0x20] sm:$0xff]
  %v34 = vld [vmem:[%s0 + $0x28] sm:$0xff]
  %v35 = vld [vmem:[%s0 + $0x30] sm:$0xff]
  %v36 = vld [vmem:[%s0 + $0x38] sm:$0xff]
  %v37 = vld [vmem:[%s0 + $0x40] sm:$0xff]
  %v38 = vld [vmem:[%s0 + $0x48] sm:$0xff]
  %v39 = vld [vmem:[%s0 + $0x50] sm:$0xff]
  %v40 = vld [vmem:[%s0 + $0x58] sm:$0xff]
  %v41 = vld [vmem:[%s0 + $0x60] sm:$0xff]
  %v42 = vld [vmem:[%s0 + $0x68] sm:$0xff]
  %v43 = vld [vmem:[%s0 + $0x70] sm:$0xff]
  %v44 = vld [vmem:[%s0 + $0x78] sm:$0xff]
  %v45 = vpack.c.bf16 %v37, %v29
  %v46 = vpack.c.bf16 %v38, %v30
  %v47 = vpack.c.bf16 %v39, %v31
  %v48 = vpack.c.bf16 %v40, %v32
  %v49 = vpack.c.bf16 %v41, %v33
  %v50 = vpack.c.bf16 %v42, %v34
  %v51 = vpack.c.bf16 %v43, %v35
  %v52 = vpack.c.bf16 %v44, %v36
  %v53 = vld [vmem:[%s1] sm:$0xf]
  %v54 = vld [vmem:[%s1 + $0x4] sm:$0xf]
  %v55 = vld [vmem:[%s1 + $0x8] sm:$0xf]
  %v56 = vld [vmem:[%s1 + $0xc] sm:$0xf]
  %v57 = vld [vmem:[%s1 + $0x10] sm:$0xf]
  %v58 = vld [vmem:[%s1 + $0x14] sm:$0xf]
  %v59 = vld [vmem:[%s1 + $0x18] sm:$0xf]
  %v60 = vld [vmem:[%s1 + $0x1c] sm:$0xf]
  %v61 = vld [vmem:[%s1 + $0x20] sm:$0xf]
  %v62 = vld [vmem:[%s1 + $0x24] sm:$0xf]
  %v63 = vld [vmem:[%s1 + $0x28] sm:$0xf]
  %v64 = vld [vmem:[%s1 + $0x2c] sm:$0xf]
  %v65 = vld [vmem:[%s1 + $0x30] sm:$0xf]
  %v66 = vld [vmem:[%s1 + $0x34] sm:$0xf]
  %v67 = vld [vmem:[%s1 + $0x38] sm:$0xf]
  %v68 = vld [vmem:[%s1 + $0x3c] sm:$0xf]
  %v69 = vld [vmem:[%s1 + $0x40] sm:$0xf]
  %v70 = vld [vmem:[%s1 + $0x44] sm:$0xf]
  %v71 = vld [vmem:[%s1 + $0x48] sm:$0xf]
  %v72 = vld [vmem:[%s1 + $0x4c] sm:$0xf]
  %v73 = vld [vmem:[%s1 + $0x50] sm:$0xf]
  %v74 = vld [vmem:[%s1 + $0x54] sm:$0xf]
  %v75 = vld [vmem:[%s1 + $0x58] sm:$0xf]
  %v76 = vld [vmem:[%s1 + $0x5c] sm:$0xf]
  %v77 = vld [vmem:[%s1 + $0x60] sm:$0xf]
  %v78 = vld [vmem:[%s1 + $0x64] sm:$0xf]
  %v79 = vld [vmem:[%s1 + $0x68] sm:$0xf]
  %v80 = vld [vmem:[%s1 + $0x6c] sm:$0xf]
  %v81 = vld [vmem:[%s1 + $0x70] sm:$0xf]
  %v82 = vld [vmem:[%s1 + $0x74] sm:$0xf]
  %v83 = vld [vmem:[%s1 + $0x78] sm:$0xf]
  %v84 = vld [vmem:[%s1 + $0x7c] sm:$0xf]
  %v85 = vld [vmem:[%s1 + $0x80] sm:$0xf]
  %v86 = vld [vmem:[%s1 + $0x84] sm:$0xf]
  %v87 = vld [vmem:[%s1 + $0x88] sm:$0xf]
  %v88 = vld [vmem:[%s1 + $0x8c] sm:$0xf]
  %v89 = vld [vmem:[%s1 + $0x90] sm:$0xf]
  %v90 = vld [vmem:[%s1 + $0x94] sm:$0xf]
  %v91 = vld [vmem:[%s1 + $0x98] sm:$0xf]
  %v92 = vld [vmem:[%s1 + $0x9c] sm:$0xf]
  %v93 = vld [vmem:[%s1 + $0xa0] sm:$0xf]
  %v94 = vld [vmem:[%s1 + $0xa4] sm:$0xf]
  %v95 = vld [vmem:[%s1 + $0xa8] sm:$0xf]
  %v96 = vld [vmem:[%s1 + $0xac] sm:$0xf]
  %v97 = vld [vmem:[%s1 + $0xb0] sm:$0xf]
  %v98 = vld [vmem:[%s1 + $0xb4] sm:$0xf]
  %v99 = vld [vmem:[%s1 + $0xb8] sm:$0xf]
  %v100 = vld [vmem:[%s1 + $0xbc] sm:$0xf]
  %v101 = vld [vmem:[%s1 + $0xc0] sm:$0xf]
  %v102 = vld [vmem:[%s1 + $0xc4] sm:$0xf]
  %v103 = vld [vmem:[%s1 + $0xc8] sm:$0xf]
  %v104 = vld [vmem:[%s1 + $0xcc] sm:$0xf]
  %v105 = vld [vmem:[%s1 + $0xd0] sm:$0xf]
  %v106 = vld [vmem:[%s1 + $0xd4] sm:$0xf]
  %v107 = vld [vmem:[%s1 + $0xd8] sm:$0xf]
  %v108 = vld [vmem:[%s1 + $0xdc] sm:$0xf]
  %v109 = vld [vmem:[%s1 + $0xe0] sm:$0xf]
  %v110 = vld [vmem:[%s1 + $0xe4] sm:$0xf]
  %v111 = vld [vmem:[%s1 + $0xe8] sm:$0xf]
  %v112 = vld [vmem:[%s1 + $0xec] sm:$0xf]
  %v113 = vld [vmem:[%s1 + $0xf0] sm:$0xf]
  %v114 = vld [vmem:[%s1 + $0xf4] sm:$0xf]
  %v115 = vld [vmem:[%s1 + $0xf8] sm:$0xf]
  %v116 = vld [vmem:[%s1 + $0xfc] sm:$0xf]
  %v117 = vld [vmem:[%s1 + $0x100] sm:$0xf]
  %v118 = vld [vmem:[%s1 + $0x104] sm:$0xf]
  %v119 = vld [vmem:[%s1 + $0x108] sm:$0xf]
  %v120 = vld [vmem:[%s1 + $0x10c] sm:$0xf]
  %v121 = vld [vmem:[%s1 + $0x110] sm:$0xf]
  %v122 = vld [vmem:[%s1 + $0x114] sm:$0xf]
  %v123 = vld [vmem:[%s1 + $0x118] sm:$0xf]
  %v124 = vld [vmem:[%s1 + $0x11c] sm:$0xf]
  %v125 = vld [vmem:[%s1 + $0x120] sm:$0xf]
  %v126 = vld [vmem:[%s1 + $0x124] sm:$0xf]
  %v127 = vld [vmem:[%s1 + $0x128] sm:$0xf]
  %v128 = vld [vmem:[%s1 + $0x12c] sm:$0xf]
  %v129 = vld [vmem:[%s1 + $0x130] sm:$0xf]
  %v130 = vld [vmem:[%s1 + $0x134] sm:$0xf]
  %v131 = vld [vmem:[%s1 + $0x138] sm:$0xf]
  %v132 = vld [vmem:[%s1 + $0x13c] sm:$0xf]
  %v133 = vld [vmem:[%s1 + $0x140] sm:$0xf]
  %v134 = vld [vmem:[%s1 + $0x144] sm:$0xf]
  %v135 = vld [vmem:[%s1 + $0x148] sm:$0xf]
  %v136 = vld [vmem:[%s1 + $0x14c] sm:$0xf]
  %v137 = vld [vmem:[%s1 + $0x150] sm:$0xf]
  %v138 = vld [vmem:[%s1 + $0x154] sm:$0xf]
  %v139 = vld [vmem:[%s1 + $0x158] sm:$0xf]
  %v140 = vld [vmem:[%s1 + $0x15c] sm:$0xf]
  %v141 = vld [vmem:[%s1 + $0x160] sm:$0xf]
  %v142 = vld [vmem:[%s1 + $0x164] sm:$0xf]
  %v143 = vld [vmem:[%s1 + $0x168] sm:$0xf]
  %v144 = vld [vmem:[%s1 + $0x16c] sm:$0xf]
  %v145 = vld [vmem:[%s1 + $0x170] sm:$0xf]
  %v146 = vld [vmem:[%s1 + $0x174] sm:$0xf]
  %v147 = vld [vmem:[%s1 + $0x178] sm:$0xf]
  %v148 = vld [vmem:[%s1 + $0x17c] sm:$0xf]
  %v149 = vld [vmem:[%s1 + $0x180] sm:$0xf]
  %v150 = vld [vmem:[%s1 + $0x184] sm:$0xf]
  %v151 = vld [vmem:[%s1 + $0x188] sm:$0xf]
  %v152 = vld [vmem:[%s1 + $0x18c] sm:$0xf]
  %v153 = vld [vmem:[%s1 + $0x190] sm:$0xf]
  %v154 = vld [vmem:[%s1 + $0x194] sm:$0xf]
  %v155 = vld [vmem:[%s1 + $0x198] sm:$0xf]
  %v156 = vld [vmem:[%s1 + $0x19c] sm:$0xf]
  %v157 = vld [vmem:[%s1 + $0x1a0] sm:$0xf]
  %v158 = vld [vmem:[%s1 + $0x1a4] sm:$0xf]
  %v159 = vld [vmem:[%s1 + $0x1a8] sm:$0xf]
  %v160 = vld [vmem:[%s1 + $0x1ac] sm:$0xf]
  %v161 = vld [vmem:[%s1 + $0x1b0] sm:$0xf]
  %v162 = vld [vmem:[%s1 + $0x1b4] sm:$0xf]
  %v163 = vld [vmem:[%s1 + $0x1b8] sm:$0xf]
  %v164 = vld [vmem:[%s1 + $0x1bc] sm:$0xf]
  %v165 = vld [vmem:[%s1 + $0x1c0] sm:$0xf]
  %v166 = vld [vmem:[%s1 + $0x1c4] sm:$0xf]
  %v167 = vld [vmem:[%s1 + $0x1c8] sm:$0xf]
  %v168 = vld [vmem:[%s1 + $0x1cc] sm:$0xf]
  %v169 = vld [vmem:[%s1 + $0x1d0] sm:$0xf]
  %v170 = vld [vmem:[%s1 + $0x1d4] sm:$0xf]
  %v171 = vld [vmem:[%s1 + $0x1d8] sm:$0xf]
  %v172 = vld [vmem:[%s1 + $0x1dc] sm:$0xf]
  %v173 = vld [vmem:[%s1 + $0x1e0] sm:$0xf]
  %v174 = vld [vmem:[%s1 + $0x1e4] sm:$0xf]
  %v175 = vld [vmem:[%s1 + $0x1e8] sm:$0xf]
  %v176 = vld [vmem:[%s1 + $0x1ec] sm:$0xf]
  %v177 = vld [vmem:[%s1 + $0x1f0] sm:$0xf]
  %v178 = vld [vmem:[%s1 + $0x1f4] sm:$0xf]
  %v179 = vld [vmem:[%s1 + $0x1f8] sm:$0xf]
  %v180 = vld [vmem:[%s1 + $0x1fc] sm:$0xf]
  %v181 = vld [vmem:[%s2] sm:$0x1]
  %v183 = vlaneseq
  %v184 = vshrl.u32 %v183, 7
  %v185 = vsub.s32 0, %v184
  %v186 = vrot.slane %v181, %v185
  %v316 = vunpack.c.l.b16 %v53
  %v317 = vunpack.c.l.b16 %v54
  %v318 = vunpack.c.l.b16 %v55
  %v319 = vunpack.c.l.b16 %v56
  %v320 = vunpack.c.l.b16 %v57
  %v321 = vunpack.c.l.b16 %v58
  %v322 = vunpack.c.l.b16 %v59
  %v323 = vunpack.c.l.b16 %v60
  %v324 = vunpack.c.l.b16 %v61
  %v325 = vunpack.c.l.b16 %v62
  %v326 = vunpack.c.l.b16 %v63
  %v327 = vunpack.c.l.b16 %v64
  %v328 = vunpack.c.l.b16 %v65
  %v329 = vunpack.c.l.b16 %v66
  %v330 = vunpack.c.l.b16 %v67
  %v331 = vunpack.c.l.b16 %v68
  %v332 = vunpack.c.l.b16 %v69
  %v333 = vunpack.c.l.b16 %v70
  %v334 = vunpack.c.l.b16 %v71
  %v335 = vunpack.c.l.b16 %v72
  %v336 = vunpack.c.l.b16 %v73
  %v337 = vunpack.c.l.b16 %v74
  %v338 = vunpack.c.l.b16 %v75
  %v339 = vunpack.c.l.b16 %v76
  %v340 = vunpack.c.l.b16 %v77
  %v341 = vunpack.c.l.b16 %v78
  %v342 = vunpack.c.l.b16 %v79
  %v343 = vunpack.c.l.b16 %v80
  %v344 = vunpack.c.l.b16 %v81
  %v345 = vunpack.c.l.b16 %v82
  %v346 = vunpack.c.l.b16 %v83
  %v347 = vunpack.c.l.b16 %v84
  %v348 = vunpack.c.l.b16 %v85
  %v349 = vunpack.c.l.b16 %v86
  %v350 = vunpack.c.l.b16 %v87
  %v351 = vunpack.c.l.b16 %v88
  %v352 = vunpack.c.l.b16 %v89
  %v353 = vunpack.c.l.b16 %v90
  %v354 = vunpack.c.l.b16 %v91
  %v355 = vunpack.c.l.b16 %v92
  %v356 = vunpack.c.l.b16 %v93
  %v357 = vunpack.c.l.b16 %v94
  %v358 = vunpack.c.l.b16 %v95
  %v359 = vunpack.c.l.b16 %v96
  %v360 = vunpack.c.l.b16 %v97
  %v361 = vunpack.c.l.b16 %v98
  %v362 = vunpack.c.l.b16 %v99
  %v363 = vunpack.c.l.b16 %v100
  %v364 = vunpack.c.l.b16 %v101
  %v365 = vunpack.c.l.b16 %v102
  %v366 = vunpack.c.l.b16 %v103
  %v367 = vunpack.c.l.b16 %v104
  %v368 = vunpack.c.l.b16 %v105
  %v369 = vunpack.c.l.b16 %v106
  %v370 = vunpack.c.l.b16 %v107
  %v371 = vunpack.c.l.b16 %v108
  %v372 = vunpack.c.l.b16 %v109
  %v373 = vunpack.c.l.b16 %v110
  %v374 = vunpack.c.l.b16 %v111
  %v375 = vunpack.c.l.b16 %v112
  %v376 = vunpack.c.l.b16 %v113
  %v377 = vunpack.c.l.b16 %v114
  %v378 = vunpack.c.l.b16 %v115
  %v379 = vunpack.c.l.b16 %v116
  %v380 = vunpack.c.l.b16 %v117
  %v381 = vunpack.c.l.b16 %v118
  %v382 = vunpack.c.l.b16 %v119
  %v383 = vunpack.c.l.b16 %v120
  %v384 = vunpack.c.l.b16 %v121
  %v385 = vunpack.c.l.b16 %v122
  %v386 = vunpack.c.l.b16 %v123
  %v387 = vunpack.c.l.b16 %v124
  %v388 = vunpack.c.l.b16 %v125
  %v389 = vunpack.c.l.b16 %v126
  %v390 = vunpack.c.l.b16 %v127
  %v391 = vunpack.c.l.b16 %v128
  %v392 = vunpack.c.l.b16 %v129
  %v393 = vunpack.c.l.b16 %v130
  %v394 = vunpack.c.l.b16 %v131
  %v395 = vunpack.c.l.b16 %v132
  %v396 = vunpack.c.l.b16 %v133
  %v397 = vunpack.c.l.b16 %v134
  %v398 = vunpack.c.l.b16 %v135
  %v399 = vunpack.c.l.b16 %v136
  %v400 = vunpack.c.l.b16 %v137
  %v401 = vunpack.c.l.b16 %v138
  %v402 = vunpack.c.l.b16 %v139
  %v403 = vunpack.c.l.b16 %v140
  %v404 = vunpack.c.l.b16 %v141
  %v405 = vunpack.c.l.b16 %v142
  %v406 = vunpack.c.l.b16 %v143
  %v407 = vunpack.c.l.b16 %v144
  %v408 = vunpack.c.l.b16 %v145
  %v409 = vunpack.c.l.b16 %v146
  %v410 = vunpack.c.l.b16 %v147
  %v411 = vunpack.c.l.b16 %v148
  %v412 = vunpack.c.l.b16 %v149
  %v413 = vunpack.c.l.b16 %v150
  %v414 = vunpack.c.l.b16 %v151
  %v415 = vunpack.c.l.b16 %v152
  %v416 = vunpack.c.l.b16 %v153
  %v417 = vunpack.c.l.b16 %v154
  %v418 = vunpack.c.l.b16 %v155
  %v419 = vunpack.c.l.b16 %v156
  %v420 = vunpack.c.l.b16 %v157
  %v421 = vunpack.c.l.b16 %v158
  %v422 = vunpack.c.l.b16 %v159
  %v423 = vunpack.c.l.b16 %v160
  %v424 = vunpack.c.l.b16 %v161
  %v425 = vunpack.c.l.b16 %v162
  %v426 = vunpack.c.l.b16 %v163
  %v427 = vunpack.c.l.b16 %v164
  %v428 = vunpack.c.l.b16 %v165
  %v429 = vunpack.c.l.b16 %v166
  %v430 = vunpack.c.l.b16 %v167
  %v431 = vunpack.c.l.b16 %v168
  %v432 = vunpack.c.l.b16 %v169
  %v433 = vunpack.c.l.b16 %v170
  %v434 = vunpack.c.l.b16 %v171
  %v435 = vunpack.c.l.b16 %v172
  %v436 = vunpack.c.l.b16 %v173
  %v437 = vunpack.c.l.b16 %v174
  %v438 = vunpack.c.l.b16 %v175
  %v439 = vunpack.c.l.b16 %v176
  %v440 = vunpack.c.l.b16 %v177
  %v441 = vunpack.c.l.b16 %v178
  %v442 = vunpack.c.l.b16 %v179
  %v443 = vunpack.c.l.b16 %v180
  %v444 = vpack.c.b16 %v317, %v316
  %v445 = vpack.c.b16 %v319, %v318
  %v446 = vpack.c.b16 %v321, %v320
  %v447 = vpack.c.b16 %v323, %v322
  %v448 = vpack.c.b16 %v325, %v324
  %v449 = vpack.c.b16 %v327, %v326
  %v450 = vpack.c.b16 %v329, %v328
  %v451 = vpack.c.b16 %v331, %v330
  %v452 = vpack.c.b16 %v333, %v332
  %v453 = vpack.c.b16 %v335, %v334
  %v454 = vpack.c.b16 %v337, %v336
  %v455 = vpack.c.b16 %v339, %v338
  %v456 = vpack.c.b16 %v341, %v340
  %v457 = vpack.c.b16 %v343, %v342
  %v458 = vpack.c.b16 %v345, %v344
  %v459 = vpack.c.b16 %v347, %v346
  %v460 = vpack.c.b16 %v349, %v348
  %v461 = vpack.c.b16 %v351, %v350
  %v462 = vpack.c.b16 %v353, %v352
  %v463 = vpack.c.b16 %v355, %v354
  %v464 = vpack.c.b16 %v357, %v356
  %v465 = vpack.c.b16 %v359, %v358
  %v466 = vpack.c.b16 %v361, %v360
  %v467 = vpack.c.b16 %v363, %v362
  %v468 = vpack.c.b16 %v365, %v364
  %v469 = vpack.c.b16 %v367, %v366
  %v470 = vpack.c.b16 %v369, %v368
  %v471 = vpack.c.b16 %v371, %v370
  %v472 = vpack.c.b16 %v373, %v372
  %v473 = vpack.c.b16 %v375, %v374
  %v474 = vpack.c.b16 %v377, %v376
  %v475 = vpack.c.b16 %v379, %v378
  %v476 = vpack.c.b16 %v381, %v380
  %v477 = vpack.c.b16 %v383, %v382
  %v478 = vpack.c.b16 %v385, %v384
  %v479 = vpack.c.b16 %v387, %v386
  %v480 = vpack.c.b16 %v389, %v388
  %v481 = vpack.c.b16 %v391, %v390
  %v482 = vpack.c.b16 %v393, %v392
  %v483 = vpack.c.b16 %v395, %v394
  %v484 = vpack.c.b16 %v397, %v396
  %v485 = vpack.c.b16 %v399, %v398
  %v486 = vpack.c.b16 %v401, %v400
  %v487 = vpack.c.b16 %v403, %v402
  %v488 = vpack.c.b16 %v405, %v404
  %v489 = vpack.c.b16 %v407, %v406
  %v490 = vpack.c.b16 %v409, %v408
  %v491 = vpack.c.b16 %v411, %v410
  %v492 = vpack.c.b16 %v413, %v412
  %v493 = vpack.c.b16 %v415, %v414
  %v494 = vpack.c.b16 %v417, %v416
  %v495 = vpack.c.b16 %v419, %v418
  %v496 = vpack.c.b16 %v421, %v420
  %v497 = vpack.c.b16 %v423, %v422
  %v498 = vpack.c.b16 %v425, %v424
  %v499 = vpack.c.b16 %v427, %v426
  %v500 = vpack.c.b16 %v429, %v428
  %v501 = vpack.c.b16 %v431, %v430
  %v502 = vpack.c.b16 %v433, %v432
  %v503 = vpack.c.b16 %v435, %v434
  %v504 = vpack.c.b16 %v437, %v436
  %v505 = vpack.c.b16 %v439, %v438
  %v506 = vpack.c.b16 %v441, %v440
  %v507 = vpack.c.b16 %v443, %v442
  %572 = vmatprep.subr.bf16.mxu0 0
  %573 = vmatpush1.bf16.msra.mxu0 %v451
  %574 = vmatprep.subr.bf16.mxu0 0
  %575 = vmatpush1.bf16.msra.mxu0 %v450
  %576 = vmatprep.subr.bf16.mxu0 0
  %577 = vmatpush1.bf16.msra.mxu0 %v449
  %578 = vmatprep.subr.bf16.mxu0 0
  %579 = vmatpush1.bf16.msra.mxu0 %v448
  %580 = vmatprep.subr.bf16.mxu0 0
  %581 = vmatpush1.bf16.msra.mxu0 %v447
  %582 = vmatprep.subr.bf16.mxu0 0
  %583 = vmatpush1.bf16.msra.mxu0 %v446
  %584 = vmatprep.subr.bf16.mxu0 0
  %585 = vmatpush1.bf16.msra.mxu0 %v445
  %586 = vmatprep.subr.bf16.mxu0 0
  %587 = vmatpush1.bf16.msra.mxu0 %v444
  %588 = vmatprep.subr.bf16.mxu0 0
  %589 = vmatpush2.bf16.msra.mxu0 %v459
  %590 = vmatprep.subr.bf16.mxu0 0
  %591 = vmatpush2.bf16.msra.mxu0 %v458
  %592 = vmatprep.subr.bf16.mxu0 0
  %593 = vmatpush2.bf16.msra.mxu0 %v457
  %594 = vmatprep.subr.bf16.mxu0 0
  %595 = vmatpush2.bf16.msra.mxu0 %v456
  %596 = vmatprep.subr.bf16.mxu0 0
  %597 = vmatpush2.bf16.msra.mxu0 %v455
  %598 = vmatprep.subr.bf16.mxu0 0
  %599 = vmatpush2.bf16.msra.mxu0 %v454
  %600 = vmatprep.subr.bf16.mxu0 0
  %601 = vmatpush2.bf16.msra.mxu0 %v453
  %602 = vmatprep.subr.bf16.mxu0 0
  %603 = vmatpush2.bf16.msra.mxu0 %v452
  %604 = vmatprep.mubr.bf16.mxu0 %v46
  %605 = vmatmul.mubr.bf16.gmra.mxu0 %v45
  %v606 = vpop.f32.mrf.mxu0
  %v607 = vadd.f32 %v186, %v606
  %v608 = vpop.f32.mrf.mxu0
  %v609 = vpop.f32.mrf.mxu0
  %v610 = vadd.f32 %v186, %v609
  %v611 = vpop.f32.mrf.mxu0
  %612 = vdwg.mxu0
  %613 = vmatprep.subr.bf16.mxu0 0
  %614 = vmatpush1.bf16.msra.mxu0 %v467
  %615 = vmatprep.subr.bf16.mxu0 0
  %616 = vmatpush1.bf16.msra.mxu0 %v466
  %617 = vmatprep.subr.bf16.mxu0 0
  %618 = vmatpush1.bf16.msra.mxu0 %v465
  %619 = vmatprep.subr.bf16.mxu0 0
  %620 = vmatpush1.bf16.msra.mxu0 %v464
  %621 = vmatprep.subr.bf16.mxu0 0
  %622 = vmatpush1.bf16.msra.mxu0 %v463
  %623 = vmatprep.subr.bf16.mxu0 0
  %624 = vmatpush1.bf16.msra.mxu0 %v462
  %625 = vmatprep.subr.bf16.mxu0 0
  %626 = vmatpush1.bf16.msra.mxu0 %v461
  %627 = vmatprep.subr.bf16.mxu0 0
  %628 = vmatpush1.bf16.msra.mxu0 %v460
  %629 = vmatprep.subr.bf16.mxu0 0
  %630 = vmatpush2.bf16.msra.mxu0 %v475
  %631 = vmatprep.subr.bf16.mxu0 0
  %632 = vmatpush2.bf16.msra.mxu0 %v474
  %633 = vmatprep.subr.bf16.mxu0 0
  %634 = vmatpush2.bf16.msra.mxu0 %v473
  %635 = vmatprep.subr.bf16.mxu0 0
  %636 = vmatpush2.bf16.msra.mxu0 %v472
  %637 = vmatprep.subr.bf16.mxu0 0
  %638 = vmatpush2.bf16.msra.mxu0 %v471
  %639 = vmatprep.subr.bf16.mxu0 0
  %640 = vmatpush2.bf16.msra.mxu0 %v470
  %641 = vmatprep.subr.bf16.mxu0 0
  %642 = vmatpush2.bf16.msra.mxu0 %v469
  %643 = vmatprep.subr.bf16.mxu0 0
  %644 = vmatpush2.bf16.msra.mxu0 %v468
  %645 = vmatprep.mubr.bf16.mxu0 %v48
  %646 = vmatmul.mubr.bf16.gmra.mxu0 %v47
  %v647 = vpop.f32.mrf.mxu0
  %v648 = vadd.f32 %v607, %v647
  %v649 = vpop.f32.mrf.mxu0
  %v650 = vpop.f32.mrf.mxu0
  %v651 = vadd.f32 %v610, %v650
  %v652 = vpop.f32.mrf.mxu0
  %653 = vdwg.mxu0
  %654 = vmatprep.subr.bf16.mxu0 0
  %655 = vmatpush1.bf16.msra.mxu0 %v483
  %656 = vmatprep.subr.bf16.mxu0 0
  %657 = vmatpush1.bf16.msra.mxu0 %v482
  %658 = vmatprep.subr.bf16.mxu0 0
  %659 = vmatpush1.bf16.msra.mxu0 %v481
  %660 = vmatprep.subr.bf16.mxu0 0
  %661 = vmatpush1.bf16.msra.mxu0 %v480
  %662 = vmatprep.subr.bf16.mxu0 0
  %663 = vmatpush1.bf16.msra.mxu0 %v479
  %664 = vmatprep.subr.bf16.mxu0 0
  %665 = vmatpush1.bf16.msra.mxu0 %v478
  %666 = vmatprep.subr.bf16.mxu0 0
  %667 = vmatpush1.bf16.msra.mxu0 %v477
  %668 = vmatprep.subr.bf16.mxu0 0
  %669 = vmatpush1.bf16.msra.mxu0 %v476
  %670 = vmatprep.subr.bf16.mxu0 0
  %671 = vmatpush2.bf16.msra.mxu0 %v491
  %672 = vmatprep.subr.bf16.mxu0 0
  %673 = vmatpush2.bf16.msra.mxu0 %v490
  %674 = vmatprep.subr.bf16.mxu0 0
  %675 = vmatpush2.bf16.msra.mxu0 %v489
  %676 = vmatprep.subr.bf16.mxu0 0
  %677 = vmatpush2.bf16.msra.mxu0 %v488
  %678 = vmatprep.subr.bf16.mxu0 0
  %679 = vmatpush2.bf16.msra.mxu0 %v487
  %680 = vmatprep.subr.bf16.mxu0 0
  %681 = vmatpush2.bf16.msra.mxu0 %v486
  %682 = vmatprep.subr.bf16.mxu0 0
  %683 = vmatpush2.bf16.msra.mxu0 %v485
  %684 = vmatprep.subr.bf16.mxu0 0
  %685 = vmatpush2.bf16.msra.mxu0 %v484
  %686 = vmatprep.mubr.bf16.mxu0 %v50
  %687 = vmatmul.mubr.bf16.gmra.mxu0 %v49
  %v688 = vpop.f32.mrf.mxu0
  %v689 = vadd.f32 %v648, %v688
  %v690 = vpop.f32.mrf.mxu0
  %v691 = vpop.f32.mrf.mxu0
  %v692 = vadd.f32 %v651, %v691
  %v693 = vpop.f32.mrf.mxu0
  %694 = vdwg.mxu0
  %695 = vmatprep.subr.bf16.mxu0 0
  %696 = vmatpush1.bf16.msra.mxu0 %v499
  %697 = vmatprep.subr.bf16.mxu0 0
  %698 = vmatpush1.bf16.msra.mxu0 %v498
  %699 = vmatprep.subr.bf16.mxu0 0
  %700 = vmatpush1.bf16.msra.mxu0 %v497
  %701 = vmatprep.subr.bf16.mxu0 0
  %702 = vmatpush1.bf16.msra.mxu0 %v496
  %703 = vmatprep.subr.bf16.mxu0 0
  %704 = vmatpush1.bf16.msra.mxu0 %v495
  %705 = vmatprep.subr.bf16.mxu0 0
  %706 = vmatpush1.bf16.msra.mxu0 %v494
  %707 = vmatprep.subr.bf16.mxu0 0
  %708 = vmatpush1.bf16.msra.mxu0 %v493
  %709 = vmatprep.subr.bf16.mxu0 0
  %710 = vmatpush1.bf16.msra.mxu0 %v492
  %711 = vmatprep.subr.bf16.mxu0 0
  %712 = vmatpush2.bf16.msra.mxu0 %v507
  %713 = vmatprep.subr.bf16.mxu0 0
  %714 = vmatpush2.bf16.msra.mxu0 %v506
  %715 = vmatprep.subr.bf16.mxu0 0
  %716 = vmatpush2.bf16.msra.mxu0 %v505
  %717 = vmatprep.subr.bf16.mxu0 0
  %718 = vmatpush2.bf16.msra.mxu0 %v504
  %719 = vmatprep.subr.bf16.mxu0 0
  %720 = vmatpush2.bf16.msra.mxu0 %v503
  %721 = vmatprep.subr.bf16.mxu0 0
  %722 = vmatpush2.bf16.msra.mxu0 %v502
  %723 = vmatprep.subr.bf16.mxu0 0
  %724 = vmatpush2.bf16.msra.mxu0 %v501
  %725 = vmatprep.subr.bf16.mxu0 0
  %726 = vmatpush2.bf16.msra.mxu0 %v500
  %727 = vmatprep.mubr.bf16.mxu0 %v52
  %728 = vmatmul.mubr.bf16.gmra.mxu0 %v51
  %v729 = vpop.f32.mrf.mxu0
  %v730 = vadd.f32 %v689, %v729
  %v731 = vpop.f32.mrf.mxu0
  %v732 = vpop.f32.mrf.mxu0
  %v733 = vadd.f32 %v692, %v732
  %v734 = vpop.f32.mrf.mxu0
  %735 = vdwg.mxu0
  %v736 = vmax.f32 %v730, 0.0
  %v737 = vmax.f32 %v733, 0.0
  %v738 = vpack.c.bf16 %v737, %v736
  %v739 = vld [vmem:[%s3] sm:$0xff]
  %v740 = vld [vmem:[%s3 + $0x8] sm:$0xff]
  %v741 = vld [vmem:[%s3 + $0x10] sm:$0xff]
  %v742 = vld [vmem:[%s3 + $0x18] sm:$0xff]
  %v743 = vld [vmem:[%s3 + $0x20] sm:$0xff]
  %v744 = vld [vmem:[%s3 + $0x28] sm:$0xff]
  %v745 = vld [vmem:[%s3 + $0x30] sm:$0xff]
  %v746 = vld [vmem:[%s3 + $0x38] sm:$0xff]
  %v747 = vld [vmem:[%s3 + $0x40] sm:$0xff]
  %v748 = vld [vmem:[%s3 + $0x48] sm:$0xff]
  %v749 = vld [vmem:[%s3 + $0x50] sm:$0xff]
  %v750 = vld [vmem:[%s3 + $0x58] sm:$0xff]
  %v751 = vld [vmem:[%s3 + $0x60] sm:$0xff]
  %v752 = vld [vmem:[%s3 + $0x68] sm:$0xff]
  %v753 = vld [vmem:[%s3 + $0x70] sm:$0xff]
  %v754 = vld [vmem:[%s3 + $0x78] sm:$0xff]
  %v755 = vld [vmem:[%s4] sm:$0x3]
  %v757 = vlaneseq
  %v758 = vshrl.u32 %v757, 7
  %v759 = vsub.s32 0, %v758
  %v760 = vrot.slane %v755, %v759
  %v761 = vlaneseq
  %v762 = vshrl.u32 %v761, 7
  %v763 = vsub.s32 1, %v762
  %v764 = vrot.slane %v755, %v763
  %v783 = vunpack.c.l.b16 %v739
  %v784 = vunpack.c.h.b16 %v739
  %v785 = vunpack.c.l.b16 %v740
  %v786 = vunpack.c.h.b16 %v740
  %v787 = vunpack.c.l.b16 %v741
  %v788 = vunpack.c.h.b16 %v741
  %v789 = vunpack.c.l.b16 %v742
  %v790 = vunpack.c.h.b16 %v742
  %v791 = vunpack.c.l.b16 %v743
  %v792 = vunpack.c.h.b16 %v743
  %v793 = vunpack.c.l.b16 %v744
  %v794 = vunpack.c.h.b16 %v744
  %v795 = vunpack.c.l.b16 %v745
  %v796 = vunpack.c.h.b16 %v745
  %v797 = vunpack.c.l.b16 %v746
  %v798 = vunpack.c.h.b16 %v746
  %v799 = vunpack.c.l.b16 %v747
  %v800 = vunpack.c.h.b16 %v747
  %v801 = vunpack.c.l.b16 %v748
  %v802 = vunpack.c.h.b16 %v748
  %v803 = vunpack.c.l.b16 %v749
  %v804 = vunpack.c.h.b16 %v749
  %v805 = vunpack.c.l.b16 %v750
  %v806 = vunpack.c.h.b16 %v750
  %v807 = vunpack.c.l.b16 %v751
  %v808 = vunpack.c.h.b16 %v751
  %v809 = vunpack.c.l.b16 %v752
  %v810 = vunpack.c.h.b16 %v752
  %v811 = vunpack.c.l.b16 %v753
  %v812 = vunpack.c.h.b16 %v753
  %v813 = vunpack.c.l.b16 %v754
  %v814 = vunpack.c.h.b16 %v754
  %v815 = vpack.c.b16 %v785, %v783
  %v816 = vpack.c.b16 %v786, %v784
  %v817 = vpack.c.b16 %v789, %v787
  %v818 = vpack.c.b16 %v790, %v788
  %v819 = vpack.c.b16 %v793, %v791
  %v820 = vpack.c.b16 %v794, %v792
  %v821 = vpack.c.b16 %v797, %v795
  %v822 = vpack.c.b16 %v798, %v796
  %v823 = vpack.c.b16 %v801, %v799
  %v824 = vpack.c.b16 %v802, %v800
  %v825 = vpack.c.b16 %v805, %v803
  %v826 = vpack.c.b16 %v806, %v804
  %v827 = vpack.c.b16 %v809, %v807
  %v828 = vpack.c.b16 %v810, %v808
  %v829 = vpack.c.b16 %v813, %v811
  %v830 = vpack.c.b16 %v814, %v812
  %847 = vmatprep.subr.bf16.mxu0 %v830
  %848 = vmatpush1.bf16.msra.mxu0 %v829
  %849 = vmatprep.subr.bf16.mxu0 %v828
  %850 = vmatpush1.bf16.msra.mxu0 %v827
  %851 = vmatprep.subr.bf16.mxu0 %v826
  %852 = vmatpush1.bf16.msra.mxu0 %v825
  %853 = vmatprep.subr.bf16.mxu0 %v824
  %854 = vmatpush1.bf16.msra.mxu0 %v823
  %855 = vmatprep.subr.bf16.mxu0 %v822
  %856 = vmatpush1.bf16.msra.mxu0 %v821
  %857 = vmatprep.subr.bf16.mxu0 %v820
  %858 = vmatpush1.bf16.msra.mxu0 %v819
  %859 = vmatprep.subr.bf16.mxu0 %v818
  %860 = vmatpush1.bf16.msra.mxu0 %v817
  %861 = vmatprep.subr.bf16.mxu0 %v816
  %862 = vmatpush1.bf16.msra.mxu0 %v815
  %863 = vmatprep.subr.bf16.mxu0 0
  %864 = vmatpush2.bf16.msra.mxu0 0
  %865 = vmatprep.subr.bf16.mxu0 0
  %866 = vmatpush2.bf16.msra.mxu0 0
  %867 = vmatprep.subr.bf16.mxu0 0
  %868 = vmatpush2.bf16.msra.mxu0 0
  %869 = vmatprep.subr.bf16.mxu0 0
  %870 = vmatpush2.bf16.msra.mxu0 0
  %871 = vmatprep.subr.bf16.mxu0 0
  %872 = vmatpush2.bf16.msra.mxu0 0
  %873 = vmatprep.subr.bf16.mxu0 0
  %874 = vmatpush2.bf16.msra.mxu0 0
  %875 = vmatprep.subr.bf16.mxu0 0
  %876 = vmatpush2.bf16.msra.mxu0 0
  %877 = vmatprep.subr.bf16.mxu0 0
  %878 = vmatpush2.bf16.msra.mxu0 0
  %879 = vmatprep.mubr.bf16.mxu0 0
  %880 = vmatmul.mubr.bf16.gmra.mxu0 %v738
  %v881 = vpop.f32.mrf.mxu0
  %v882 = vadd.f32 %v760, %v881
  %v883 = vpop.f32.mrf.mxu0
  %v884 = vadd.f32 %v764, %v883
  %v885 = vpop.f32.mrf.mxu0
  %v886 = vadd.f32 %v760, %v885
  %v887 = vpop.f32.mrf.mxu0
  %v888 = vadd.f32 %v764, %v887
  %889 = vdwg.mxu0
  %890 = vst [vmem:[%s7] sm:$0xff] %v882
  %891 = vst [vmem:[%s7 + $0x8] sm:$0xff] %v886
  %v892 = vmax.f32 %v884, 0.0
  %v893 = vmax.f32 %v888, 0.0
  %v894 = vpack.c.bf16 %v893, %v892
  %v895 = vld [vmem:[%s5] sm:$0xf]
  %v896 = vld [vmem:[%s5 + $0x4] sm:$0xf]
  %v897 = vld [vmem:[%s5 + $0x8] sm:$0xf]
  %v898 = vld [vmem:[%s5 + $0xc] sm:$0xf]
  %v899 = vld [vmem:[%s5 + $0x10] sm:$0xf]
  %v900 = vld [vmem:[%s5 + $0x14] sm:$0xf]
  %v901 = vld [vmem:[%s5 + $0x18] sm:$0xf]
  %v902 = vld [vmem:[%s5 + $0x1c] sm:$0xf]
  %v903 = vld [vmem:[%s5 + $0x20] sm:$0xf]
  %v904 = vld [vmem:[%s5 + $0x24] sm:$0xf]
  %v905 = vld [vmem:[%s5 + $0x28] sm:$0xf]
  %v906 = vld [vmem:[%s5 + $0x2c] sm:$0xf]
  %v907 = vld [vmem:[%s5 + $0x30] sm:$0xf]
  %v908 = vld [vmem:[%s5 + $0x34] sm:$0xf]
  %v909 = vld [vmem:[%s5 + $0x38] sm:$0xf]
  %v910 = vld [vmem:[%s5 + $0x3c] sm:$0xf]
  %v911 = vld [vmem:[%s6] sm:$0x1]
  %v913 = vlaneseq
  %v914 = vshrl.u32 %v913, 7
  %v915 = vsub.s32 0, %v914
  %v916 = vrot.slane %v911, %v915
  %v934 = vunpack.c.l.b16 %v895
  %v935 = vunpack.c.l.b16 %v896
  %v936 = vunpack.c.l.b16 %v897
  %v937 = vunpack.c.l.b16 %v898
  %v938 = vunpack.c.l.b16 %v899
  %v939 = vunpack.c.l.b16 %v900
  %v940 = vunpack.c.l.b16 %v901
  %v941 = vunpack.c.l.b16 %v902
  %v942 = vunpack.c.l.b16 %v903
  %v943 = vunpack.c.l.b16 %v904
  %v944 = vunpack.c.l.b16 %v905
  %v945 = vunpack.c.l.b16 %v906
  %v946 = vunpack.c.l.b16 %v907
  %v947 = vunpack.c.l.b16 %v908
  %v948 = vunpack.c.l.b16 %v909
  %v949 = vunpack.c.l.b16 %v910
  %v950 = vpack.c.b16 %v935, %v934
  %v951 = vpack.c.b16 %v937, %v936
  %v952 = vpack.c.b16 %v939, %v938
  %v953 = vpack.c.b16 %v941, %v940
  %v954 = vpack.c.b16 %v943, %v942
  %v955 = vpack.c.b16 %v945, %v944
  %v956 = vpack.c.b16 %v947, %v946
  %v957 = vpack.c.b16 %v949, %v948
  %966 = vmatprep.subr.bf16.mxu0 0
  %967 = vmatpush1.bf16.msra.mxu0 %v957
  %968 = vmatprep.subr.bf16.mxu0 0
  %969 = vmatpush1.bf16.msra.mxu0 %v956
  %970 = vmatprep.subr.bf16.mxu0 0
  %971 = vmatpush1.bf16.msra.mxu0 %v955
  %972 = vmatprep.subr.bf16.mxu0 0
  %973 = vmatpush1.bf16.msra.mxu0 %v954
  %974 = vmatprep.subr.bf16.mxu0 0
  %975 = vmatpush1.bf16.msra.mxu0 %v953
  %976 = vmatprep.subr.bf16.mxu0 0
  %977 = vmatpush1.bf16.msra.mxu0 %v952
  %978 = vmatprep.subr.bf16.mxu0 0
  %979 = vmatpush1.bf16.msra.mxu0 %v951
  %980 = vmatprep.subr.bf16.mxu0 0
  %981 = vmatpush1.bf16.msra.mxu0 %v950
  %982 = vmatprep.subr.bf16.mxu0 0
  %983 = vmatpush2.bf16.msra.mxu0 0
  %984 = vmatprep.subr.bf16.mxu0 0
  %985 = vmatpush2.bf16.msra.mxu0 0
  %986 = vmatprep.subr.bf16.mxu0 0
  %987 = vmatpush2.bf16.msra.mxu0 0
  %988 = vmatprep.subr.bf16.mxu0 0
  %989 = vmatpush2.bf16.msra.mxu0 0
  %990 = vmatprep.subr.bf16.mxu0 0
  %991 = vmatpush2.bf16.msra.mxu0 0
  %992 = vmatprep.subr.bf16.mxu0 0
  %993 = vmatpush2.bf16.msra.mxu0 0
  %994 = vmatprep.subr.bf16.mxu0 0
  %995 = vmatpush2.bf16.msra.mxu0 0
  %996 = vmatprep.subr.bf16.mxu0 0
  %997 = vmatpush2.bf16.msra.mxu0 0
  %998 = vmatprep.mubr.bf16.mxu0 0
  %999 = vmatmul.mubr.bf16.gmra.mxu0 %v894
  %v1000 = vpop.f32.mrf.mxu0
  %v1001 = vadd.f32 %v916, %v1000
  %v1002 = vpop.f32.mrf.mxu0
  %v1003 = vpop.f32.mrf.mxu0
  %v1004 = vadd.f32 %v916, %v1003
  %v1005 = vpop.f32.mrf.mxu0
  %1006 = vdwg.mxu0
  %v1007 = vmul.f32 %v1001, %v1001
  %v1008 = vmul.f32 %v1004, %v1004
  %1009 = vadd.xlane.f32.xlu0 %v1007
  %v1010 = vpop.xlane.xlu0 %1009
  %1011 = vadd.xlane.f32.xlu0 %v1008
  %v1012 = vpop.xlane.xlu0 %1011
  %v1013 = vadd.f32 %v1010, 1e-12
  %v1014 = vadd.f32 %v1012, 1e-12
  %v1015 = vrsqrt.pop %v1013
  %v1016 = vrsqrt.pop %v1014
  %v1017 = vmul.f32 %v1001, %v1015
  %v1018 = vmul.f32 %v1004, %v1016
  %1019 = vst [vmem:[%s8] sm:$0xff] %v1017
  %1020 = vst [vmem:[%s8 + $0x8] sm:$0xff] %v1018
  // Predicated region
  $region30: #{comatch_forward.1} parent=0 // pred_check
    _
  $region31: #{comatch_forward.1} parent=0 // pred_check_branch
    %1022 = sbr.rel (0) target = $region33
  $region32: #{comatch_forward.1} parent=0 // pred_region
    _
  $region33: #{comatch_forward.1} parent=0 // pred_fallthru
    _
  // Predicated region
  $region34: #{comatch_forward.1} parent=0 // pred_check
    _
  $region35: #{comatch_forward.1} parent=0 // pred_check_branch
    %1024 = sbr.rel (0) target = $region37
  $region36: #{comatch_forward.1} parent=0 // pred_region
    _
  $region37: #{comatch_forward.1} parent=0 // pred_fallthru
    _
  // Predicated region
  $region38: #{comatch_forward.1} parent=0 // pred_check
    _
  $region39: #{comatch_forward.1} parent=0 // pred_check_branch
    %1026 = sbr.rel (0) target = $region41
  $region40: #{comatch_forward.1} parent=0 // pred_region
    _
  $region41: #{comatch_forward.1} parent=0 // pred_fallthru
    _
  // Predicated region
  $region42: #{comatch_forward.1} parent=0 // pred_check
    _
  $region43: #{comatch_forward.1} parent=0 // pred_check_branch
    %1028 = sbr.rel (0) target = $region45
  $region44: #{comatch_forward.1} parent=0 // pred_region
    _
  $region45: #{comatch_forward.1} parent=0 // pred_fallthru
    _

</llo_original>
